<compile_context>
chip_gen: v6e
topology: v6e:2x2x1
jax: 0.10.0
libtpu: 0.0.40
codegen_flags: <defaults>
</compile_context>

<pallas_src>
import functools

import jax
import jax.numpy as jnp
from jax.experimental import pallas as pl
from jax.experimental.pallas import tpu as pltpu


def _round_up(x, n):
    return (x + n - 1) // n * n


# Physical VMEM per TensorCore, queried once at import (conservative fallback).
try:
    _PHYS_VMEM = int(pltpu.get_tpu_info().vmem_capacity_bytes)
except Exception:  # pragma: no cover
    _PHYS_VMEM = 64 * 1024 * 1024
# Leave headroom for compiler-internal scratch / spill.
_VMEM_BUDGET = max(_PHYS_VMEM - 16 * 1024 * 1024, 24 * 1024 * 1024)


def _ffn_kernel(x_ref, w1_ref, b1_ref, w2_ref, b2_ref, o_ref, acc_ref, *,
                is_gelu, approximate_gelu):
    """One (row-tile, hidden-chunk) step of y = linear2(act(linear1(x)))."""
    c = pl.program_id(1)

    @pl.when(c == 0)
    def _():
        acc_ref[...] = jnp.zeros_like(acc_ref)

    # Cast activations per-tile on the VPU (hidden under the MXU) instead of a
    # separate full-array XLA cast pass in the wrapper.
    x = x_ref[...].astype(w1_ref.dtype)
    h = jnp.dot(x, w1_ref[...], preferred_element_type=jnp.float32)
    h = h + b1_ref[...]
    # TODO(synk): dropout1/dropout2 omitted (inference mode); training dropout
    # would use pltpu.prng_seed + pltpu.prng_random_bits masking here.
    if is_gelu:
        if approximate_gelu:
            # tanh GELU -> EUP (separate bundle slot, essentially free).
            h = 0.5 * h * (1.0 + jnp.tanh(
                jnp.float32(0.7978845608028654)
                * (h + jnp.float32(0.044715) * h * h * h)))
        else:
            # Exact GELU (torch.nn.GELU default): 0.5*x*(1+erf(x/sqrt(2))).
            h = 0.5 * h * (1.0 + jax.lax.erf(h * jnp.float32(0.7071067811865476)))
    else:
        h = jnp.maximum(h, 0.0)
    acc_ref[...] += jnp.dot(h.astype(w2_ref.dtype), w2_ref[...],
                            preferred_element_type=jnp.float32)

    @pl.when(c == pl.num_programs(1) - 1)
    def _():
        o_ref[...] = (acc_ref[...] + b2_ref[...]).astype(o_ref.dtype)


def prepare_ffn_params(w1, b1, w2, b2, *, compute_dtype=jnp.float32, align=128):
    """Pad feature dims to `align` and cast weights ONCE (parameter-prep time).

    Weights use the (d_in, d_out) layout (torch weight.T). Zero padding is
    exact: padded hidden columns give act(0 + 0) = 0 for both GELU and ReLU,
    and padded w2 rows / output columns are zero (sliced off afterwards).
    Use align=256 for very narrow layers on v6e/v7x (2x256x256 MXUs).
    """
    d_input, d_hidden = w1.shape
    d_output = w2.shape[1]
    dip = _round_up(d_input, align)
    dhp = _round_up(d_hidden, align)
    dop = _round_up(d_output, align)
    w1p = jnp.pad(w1, ((0, dip - d_input), (0, dhp - d_hidden))).astype(compute_dtype)
    w2p = jnp.pad(w2, ((0, dhp - d_hidden), (0, dop - d_output))).astype(compute_dtype)
    b1p = jnp.pad(b1, (0, dhp - d_hidden)).reshape(1, dhp).astype(jnp.float32)
    b2p = jnp.pad(b2, (0, dop - d_output)).reshape(1, dop).astype(jnp.float32)
    return w1p, b1p, w2p, b2p, d_output


@functools.partial(jax.jit,
                   static_argnames=("d_output", "tm", "tc", "is_gelu",
                                    "approximate_gelu"))
def feedforward_pallas(x, w1p, b1p, w2p, b2p, *, d_output, tm=None, tc=512,
                       is_gelu=True, approximate_gelu=False):
    """x: (..., d_input) -> (..., d_output); weights from prepare_ffn_params."""
    d_input = x.shape[-1]
    dip, dhp = w1p.shape
    dop = w2p.shape[1]
    lead = x.shape[:-1]
    m = 1
    for s in lead:
        m *= s

    x_itemsize = jnp.dtype(x.dtype).itemsize
    w_itemsize = jnp.dtype(w1p.dtype).itemsize
    out_itemsize = x_itemsize

    # ---- tile selection ---------------------------------------------------
    if tm is None:
        # 128 MiB-VMEM chips (v5e/v6e) afford a larger row tile than v7x.
        tm = 512 if _PHYS_VMEM >= 100 * 1024 * 1024 else 256
    tm_eff = min(tm, _round_up(m, 8))
    # Guarantee >= 2 row steps when possible so both v7x TensorCores /
    # megacore get work on the "parallel" axis.
    if m > 8 and _round_up(m, tm_eff) // tm_eff < 2:
        tm_eff = max(8, _round_up((tm_eff + 1) // 2, 8))

    # Hidden chunk: multiple of 128 that divides the padded hidden dim.
    tc_eff = max(128, min(_round_up(tc, 128), dhp))
    while dhp % tc_eff:
        tc_eff -= 128

    def vmem_est(tm_e, tc_e):
        return (2 * tm_e * dip * x_itemsize          # x tile (double-buffered)
                + 2 * dip * tc_e * w_itemsize        # w1 chunk (double-buffered)
                + 2 * tc_e * dop * w_itemsize        # w2 chunk (double-buffered)
                + 2 * tc_e * 4 + 2 * dop * 4         # bias chunks
                + 2 * tm_e * dop * out_itemsize      # out tile
                + tm_e * dop * 4                     # fp32 accumulator scratch
                + tm_e * tc_e * 4)                   # fp32 hidden intermediate

    # Shrink tiles until we fit the chip budget (never exceed physical VMEM).
    while vmem_est(tm_eff, tc_eff) > _VMEM_BUDGET and tc_eff > 128:
        tc_eff = max(128, (tc_eff // 2) // 128 * 128)
        while dhp % tc_eff:
            tc_eff -= 128
    while vmem_est(tm_eff, tc_eff) > _VMEM_BUDGET and tm_eff > 8:
        tm_eff = max(8, _round_up(tm_eff // 2, 8))

    mp = _round_up(m, tm_eff)
    n_rows = mp // tm_eff
    n_chunks = dhp // tc_eff
    grid = (n_rows, n_chunks)

    vmem_limit = int(min(max(vmem_est(tm_eff, tc_eff) * 2, 32 * 1024 * 1024),
                         _VMEM_BUDGET))

    # ---- input padding (activations stay in their original dtype) ----------
    x2 = x.reshape(m, d_input)
    if mp != m or dip != d_input:
        x2 = jnp.pad(x2, ((0, mp - m), (0, dip - d_input)))

    # ---- cost estimate for the XLA scheduler --------------------------------
    flops = 2 * mp * (dip * dhp + dhp * dop)
    transcendentals = mp * dhp if is_gelu else 0
    bytes_accessed = (mp * dip * x_itemsize
                      + n_rows * (dip * dhp + dhp * dop) * w_itemsize
                      + n_rows * (dhp + dop) * 4
                      + mp * dop * out_itemsize)
    cost = pl.CostEstimate(flops=int(flops),
                           transcendentals=int(transcendentals),
                           bytes_accessed=int(bytes_accessed))

    out = pl.pallas_call(
        functools.partial(_ffn_kernel, is_gelu=is_gelu,
                          approximate_gelu=approximate_gelu),
        out_shape=jax.ShapeDtypeStruct((mp, dop), x.dtype),
        grid_spec=pltpu.PrefetchScalarGridSpec(
            num_scalar_prefetch=0,
            grid=grid,
            in_specs=[
                pl.BlockSpec((tm_eff, dip), lambda i, c: (i, 0)),   # x row tile
                pl.BlockSpec((dip, tc_eff), lambda i, c: (0, c)),   # w1 chunk
                pl.BlockSpec((1, tc_eff), lambda i, c: (0, c)),     # b1 chunk
                pl.BlockSpec((tc_eff, dop), lambda i, c: (c, 0)),   # w2 chunk
                pl.BlockSpec((1, dop), lambda i, c: (0, 0)),        # b2
            ],
            out_specs=pl.BlockSpec((tm_eff, dop), lambda i, c: (i, 0)),
            scratch_shapes=[pltpu.VMEM((tm_eff, dop), jnp.float32)],
        ),
        compiler_params=pltpu.CompilerParams(
            dimension_semantics=("parallel", "arbitrary"),
            vmem_limit_bytes=vmem_limit,
        ),
        cost_estimate=cost,
    )(x2, w1p, b1p, w2p, b2p)

    out = out[:m, :d_output]
    return out.reshape(*lead, d_output)


def _reference(x, w1, b1, w2, b2, is_gelu=True):
    h = x @ w1 + b1
    h = jax.nn.gelu(h, approximate=False) if is_gelu else jnp.maximum(h, 0.0)
    return h @ w2 + b2


if __name__ == "__main__":
    # Small shapes consistent with the module's forward:
    # x: (batch=2, seq=8, d_input=32); d_hidden=64; d_output=32
    batch, seq, d_input, d_hidden, d_output = 2, 8, 32, 64, 32

    key = jax.random.PRNGKey(0)
    kx, kw1, kb1, kw2, kb2 = jax.random.split(key, 5)
    x = jax.random.normal(kx, (batch, seq, d_input), dtype=jnp.float32)
    # torch Linear stores (out, in); we keep the transposed (in, out) layout.
    w1 = jax.random.normal(kw1, (d_input, d_hidden), dtype=jnp.float32) * 0.05
    b1 = jax.random.normal(kb1, (d_hidden,), dtype=jnp.float32) * 0.05
    w2 = jax.random.normal(kw2, (d_hidden, d_output), dtype=jnp.float32) * 0.05
    b2 = jax.random.normal(kb2, (d_output,), dtype=jnp.float32) * 0.05

    y_ref = _reference(x.reshape(-1, d_input), w1, b1, w2, b2).reshape(
        batch, seq, d_output)

    # Exact (fp32) path: parity with torch's exact erf-GELU.
    w1p, b1p, w2p, b2p, d_out = prepare_ffn_params(
        w1, b1, w2, b2, compute_dtype=jnp.float32)
    y = feedforward_pallas(x, w1p, b1p, w2p, b2p, d_output=d_out)
    y = jax.block_until_ready(y)
    assert y.shape == (batch, seq, d_output)
    assert jnp.allclose(y, y_ref, atol=1e-5, rtol=1e-5)

    # Fast path: bf16 MXU inputs (wins on v5e, v6e and v7x), fp32 accumulation.
    w1b, b1b, w2b, b2b, _ = prepare_ffn_params(
        w1, b1, w2, b2, compute_dtype=jnp.bfloat16)
    y_bf16 = feedforward_pallas(x, w1b, b1b, w2b, b2b, d_output=d_out)
    y_bf16 = jax.block_until_ready(y_bf16)
    assert jnp.allclose(y_bf16, y_ref, atol=3e-2, rtol=3e-2)

    # ReLU variant (is_gelu=False) for completeness.
    y_relu = feedforward_pallas(x, w1p, b1p, w2p, b2p, d_output=d_out,
                                is_gelu=False)
    y_relu = jax.block_until_ready(y_relu)
    y_relu_ref = _reference(x.reshape(-1, d_input), w1, b1, w2, b2,
                            is_gelu=False).reshape(batch, seq, d_output)
    assert jnp.allclose(y_relu, y_relu_ref, atol=1e-5, rtol=1e-5)

    print("KERNEL_OK")
</pallas_src>

<mosaic_0001>
module attributes {stable_mosaic.version = 11 : i64} {
  func.func @_ffn_kernel(%arg0: i32, %arg1: i32, %arg2: memref<8x128xf32, #tpu.memory_space<vmem>>, %arg3: memref<128x128xf32, #tpu.memory_space<vmem>>, %arg4: memref<1x128xf32, #tpu.memory_space<vmem>>, %arg5: memref<128x128xf32, #tpu.memory_space<vmem>>, %arg6: memref<1x128xf32, #tpu.memory_space<vmem>>, %arg7: memref<8x128xf32, #tpu.memory_space<vmem>>, %arg8: memref<8x128xf32, #tpu.memory_space<vmem>>) attributes {dimension_semantics = [#tpu.dimension_semantics<parallel>, #tpu.dimension_semantics<arbitrary>], iteration_bounds = array<i64: 2, 1>, scalar_prefetch = 0 : i64, scratch_operands = 1 : i64, tpu.core_type = #tpu.core_type<tc>, window_params = [{transform_indices = @transform_0, window_bounds = array<i64: 8, 128>}, {transform_indices = @transform_1, window_bounds = array<i64: 128, 128>}, {transform_indices = @transform_2, window_bounds = array<i64: 1, 128>}, {transform_indices = @transform_3, window_bounds = array<i64: 128, 128>}, {pipeline_mode = #tpu.pipeline_mode<synchronous>, transform_indices = @transform_4, window_bounds = array<i64: 1, 128>}, {transform_indices = @transform_5, window_bounds = array<i64: 8, 128>}]} {
    %c0_i32 = arith.constant 0 : i32
    %0 = arith.cmpi eq, %arg1, %c0_i32 : i32
    %1 = arith.extui %0 : i1 to i32
    %c0_i32_0 = arith.constant 0 : i32
    %2 = arith.cmpi ne, %1, %c0_i32_0 : i32
    scf.if %2 {
      %cst_18 = arith.constant 0.000000e+00 : f32
      %25 = vector.broadcast %cst_18 : f32 to vector<8x128xf32>
      %c0_19 = arith.constant 0 : index
      %c0_20 = arith.constant 0 : index
      %26 = vector.load %arg8[%c0_19, %c0_20] : memref<8x128xf32, #tpu.memory_space<vmem>>, vector<8x128xf32>
      tpu.vector_store %arg8[%c0_19, %c0_20], %25 {strides = array<i32>} : memref<8x128xf32, #tpu.memory_space<vmem>>, vector<8x128xf32>,
    } else {
    }
    %c0 = arith.constant 0 : index
    %c0_1 = arith.constant 0 : index
    %3 = vector.load %arg2[%c0, %c0_1] : memref<8x128xf32, #tpu.memory_space<vmem>>, vector<8x128xf32>
    %c0_2 = arith.constant 0 : index
    %c0_3 = arith.constant 0 : index
    %4 = vector.load %arg3[%c0_2, %c0_3] : memref<128x128xf32, #tpu.memory_space<vmem>>, vector<128x128xf32>
    %cst = arith.constant dense<0.000000e+00> : vector<8x128xf32>
    %5 = tpu.matmul %3, %4, %cst {dimension_numbers = #tpu.dot_dimension_numbers<[1], [0], [0], [1], [0, 0, 1, 1], [], []>} : vector<8x128xf32>, vector<128x128xf32>, vector<8x128xf32> -> vector<8x128xf32>
    %c0_4 = arith.constant 0 : index
    %c0_5 = arith.constant 0 : index
    %6 = vector.load %arg4[%c0_4, %c0_5] : memref<1x128xf32, #tpu.memory_space<vmem>>, vector<1x128xf32>
    %7 = vector.broadcast %6 : vector<1x128xf32> to vector<8x128xf32>
    %8 = arith.addf %5, %7 : vector<8x128xf32>
    %cst_6 = arith.constant 5.000000e-01 : f32
    %9 = vector.broadcast %cst_6 : f32 to vector<8x128xf32>
    %10 = arith.mulf %9, %8 : vector<8x128xf32>
    %cst_7 = arith.constant 0.707106769 : f32
    %11 = vector.broadcast %cst_7 : f32 to vector<8x128xf32>
    %12 = arith.mulf %8, %11 : vector<8x128xf32>
    %13 = math.erf %12 : vector<8x128xf32>
    %cst_8 = arith.constant 1.000000e+00 : f32
    %14 = vector.broadcast %cst_8 : f32 to vector<8x128xf32>
    %15 = arith.addf %14, %13 : vector<8x128xf32>
    %16 = arith.mulf %10, %15 : vector<8x128xf32>
    %c0_9 = arith.constant 0 : index
    %c0_10 = arith.constant 0 : index
    %17 = vector.load %arg8[%c0_9, %c0_10] : memref<8x128xf32, #tpu.memory_space<vmem>>, vector<8x128xf32>
    %c0_11 = arith.constant 0 : index
    %c0_12 = arith.constant 0 : index
    %18 = vector.load %arg5[%c0_11, %c0_12] : memref<128x128xf32, #tpu.memory_space<vmem>>, vector<128x128xf32>
    %cst_13 = arith.constant dense<0.000000e+00> : vector<8x128xf32>
    %19 = tpu.matmul %16, %18, %cst_13 {dimension_numbers = #tpu.dot_dimension_numbers<[1], [0], [0], [1], [0, 0, 1, 1], [], []>} : vector<8x128xf32>, vector<128x128xf32>, vector<8x128xf32> -> vector<8x128xf32>
    %20 = arith.addf %17, %19 : vector<8x128xf32>
    %c0_14 = arith.constant 0 : index
    %c0_15 = arith.constant 0 : index
    %21 = vector.load %arg8[%c0_14, %c0_15] : memref<8x128xf32, #tpu.memory_space<vmem>>, vector<8x128xf32>
    tpu.vector_store %arg8[%c0_14, %c0_15], %20 {strides = array<i32>} : memref<8x128xf32, #tpu.memory_space<vmem>>, vector<8x128xf32>,
    %c0_i32_16 = arith.constant 0 : i32
    %22 = arith.cmpi eq, %arg1, %c0_i32_16 : i32
    %23 = arith.extui %22 : i1 to i32
    %c0_i32_17 = arith.constant 0 : i32
    %24 = arith.cmpi ne, %23, %c0_i32_17 : i32
    scf.if %24 {
      %c0_18 = arith.constant 0 : index
      %c0_19 = arith.constant 0 : index
      %25 = vector.load %arg8[%c0_18, %c0_19] : memref<8x128xf32, #tpu.memory_space<vmem>>, vector<8x128xf32>
      %c0_20 = arith.constant 0 : index
      %c0_21 = arith.constant 0 : index
      %26 = vector.load %arg6[%c0_20, %c0_21] : memref<1x128xf32, #tpu.memory_space<vmem>>, vector<1x128xf32>
      %27 = vector.broadcast %26 : vector<1x128xf32> to vector<8x128xf32>
      %28 = arith.addf %25, %27 : vector<8x128xf32>
      %c0_22 = arith.constant 0 : index
      %c0_23 = arith.constant 0 : index
      %29 = vector.load %arg7[%c0_22, %c0_23] : memref<8x128xf32, #tpu.memory_space<vmem>>, vector<8x128xf32>
      tpu.vector_store %arg7[%c0_22, %c0_23], %28 {strides = array<i32>} : memref<8x128xf32, #tpu.memory_space<vmem>>, vector<8x128xf32>,
    } else {
    }
    return
  }
  func.func @transform_0(%arg0: i32, %arg1: i32) -> (i32, i32) {
    %c0_i32 = arith.constant 0 : i32
    %c0_i32_0 = arith.constant 0 : i32
    return %arg0, %c0_i32 : i32, i32
  }
  func.func @transform_1(%arg0: i32, %arg1: i32) -> (i32, i32) {
    %c0_i32 = arith.constant 0 : i32
    %c0_i32_0 = arith.constant 0 : i32
    return %c0_i32, %arg1 : i32, i32
  }
  func.func @transform_2(%arg0: i32, %arg1: i32) -> (i32, i32) {
    %c0_i32 = arith.constant 0 : i32
    %c0_i32_0 = arith.constant 0 : i32
    return %c0_i32, %arg1 : i32, i32
  }
  func.func @transform_3(%arg0: i32, %arg1: i32) -> (i32, i32) {
    %c0_i32 = arith.constant 0 : i32
    %c0_i32_0 = arith.constant 0 : i32
    return %arg1, %c0_i32 : i32, i32
  }
  func.func @transform_4(%arg0: i32, %arg1: i32) -> (i32, i32) {
    %c0_i32 = arith.constant 0 : i32
    %c0_i32_0 = arith.constant 0 : i32
    %c0_i32_1 = arith.constant 0 : i32
    return %c0_i32, %c0_i32_0 : i32, i32
  }
  func.func @transform_5(%arg0: i32, %arg1: i32) -> (i32, i32) {
    %c0_i32 = arith.constant 0 : i32
    %c0_i32_0 = arith.constant 0 : i32
    return %arg0, %c0_i32 : i32, i32
  }
}

</mosaic_0001>

<llo_original>
// kernel: feedforward_pallas.1
$region0: #{feedforward_pallas.1}
  #allocation0 [shape = 'u32[]', space=smem, size = 0x4, offset = 0x4, fixed_abs, tag = 'smem constant byte address 0x4 - core index']
  #allocation1 [shape = 'u32[144,128]{1,0:T(1,128)}', space=vmem, size = 0x12000, scoped, tag = 'internal scratch']
  #allocation2 [shape = 'f32[8,128]{1,0:T(8,128)}', space=vmem, size = 0x1000, scoped, tag = 'scratch operand']
  %s0 = inlined_call_operand.vmem [shape: f32[16,128], index: 0, kind: input, shape index: {}]
  %s1 = inlined_call_operand.hbm [shape: f32[128,128], index: 1, kind: input, shape index: {}]
  %s2 = inlined_call_operand.vmem [shape: f32[1,128], index: 2, kind: input, shape index: {}]
  %s3 = inlined_call_operand.hbm [shape: f32[128,128], index: 3, kind: input, shape index: {}]
  %s4 = inlined_call_operand.vmem [shape: f32[1,128], index: 4, kind: input, shape index: {}]
  %s5 = inlined_call_operand.vmem [shape: f32[16,128], index: 5, kind: output, shape index: {}]
  %s6 = sld [smem:[#allocation0]]
  $region69: #{feedforward_pallas.1} parent=0
    _
  %s8 = ssub.s32 1, %s6
  %s9 = scalar_select 0, %s8, %s6
  $region1: #{feedforward_pallas.1} parent=0
    #allocation3 [shape = 'u8[65536]{0}', space=vmem, size = 0x10000, scoped, tag = 'input window, operand 1, single buffered']
    #allocation4 [shape = 's32[2]{0}', space=sflag, size = 0x8, scoped, tag = 'scoped memory for feedforward_pallas.1']
    #allocation5 [shape = 'u8[65536]{0}', space=vmem, size = 0x10000, scoped, tag = 'input window, operand 3, single buffered']
    #allocation6 [shape = 's32[1]{0}', space=sflag, size = 0x4, scoped, tag = 'scoped memory for feedforward_pallas.1']
    %10 = vsyncpa [#allocation4], 0
    %11 = vsyncpa [#allocation6], 0
    loop: start=0, step=1, limit=4
    $region2: #{feedforward_pallas.1} parent=1 // loop_pre_header
      _
    $region3: #{feedforward_pallas.1} parent=1 // loop_header
      %s13 = sphi 0, %s17
      %p14 = scmp.ge.s32.totalorder %s13, 4
      %s20 = sphi 0, %s32
      %s21 = sphi 0, %s28
      %s22 = sphi 0, %s20
      %s23 = sphi 0, %s21
      %s24 = sphi 0, %s22
      %s25 = sphi 0, %s23
      %s35 = sphi 0, %s37
      %s38 = sphi 0, %s35
      %s39 = sphi 0, %s38
      %s55 = sphi 0, %s39
      %s61 = sphi 0, %s63
      %s64 = sphi 0, %s61
      %s65 = sphi 0, %s64
      %s81 = sphi 0, %s65
      %s87 = sphi 0, %s89
      %s90 = sphi 0, %s87
      %s91 = sphi 0, %s90
      %s107 = sphi 0, %s91
      %s113 = sphi 0, %s115
      %s116 = sphi 0, %s113
      %s117 = sphi 0, %s116
      %s133 = sphi 0, %s117
      %s137 = sphi 0, %s137
      %s139 = sphi 0, %s137
      %s140 = sphi 0, %s139
      %s154 = sphi 0, %s140
      %s160 = sphi 0, %s162
      %s163 = sphi 0, %s160
      %s164 = sphi 0, %s163
      %s180 = sphi 0, %s164
    $region4: #{feedforward_pallas.1} parent=1 // loop_header_branch
      %16 = sbr.rel (%p14) target = $region8
    $region5: #{feedforward_pallas.1} parent=1 // loop_body
      %s18 = ssub.s32 %s13, 1
      %s19 = ssub.s32 %s13, 2
      %s26 = sadd.s32 1, %s21
      %p27 = scmp.ge.s32.totalorder %s26, 1
      %s28 = scalar_select %p27, 0, %s26
      %s29 = sadd.s32 1, %s20
      %s30 = scalar_select %p27, %s29, %s20
      %p31 = scmp.ge.s32.totalorder %s30, 2
      %s32 = scalar_select %p31, 0, %s30
      %s33 = ssub.s32 %s20, %s32
      %p34 = scmp.eq.s32.totalorder %s33, 0
      %s36 = sadd.s32 %s35, 1
      %s37 = scalar_select %p34, %s35, %s36
      %p40 = pneg %p34
      %p41 = scmp.eq.s32.totalorder %s13, 1
      %p42 = por %p40, %p41
      %p43 = scmp.ne.s32.totalorder %s35, %s38
      %p44 = scmp.eq.s32.totalorder %s13, 0
      %p45 = por %p43, %p44
      %p46 = scmp.ne.s32.totalorder %s35, %s38
      %p47 = scmp.eq.s32.totalorder %s18, 1
      %p48 = por %p46, %p47
      %p49 = scmp.ne.s32.totalorder %s38, %s39
      %p50 = scmp.eq.s32.totalorder %s18, 0
      %p51 = por %p49, %p50
      %p52 = scmp.ne.s32.totalorder %s38, %s39
      %p53 = scmp.eq.s32.totalorder %s19, 1
      %p54 = por %p52, %p53
      %p56 = scmp.ne.s32.totalorder %s39, %s55
      %p57 = scmp.eq.s32.totalorder %s19, 0
      %p58 = por %p56, %p57
      %s59 = ssub.s32 %s21, %s28
      %p60 = scmp.eq.s32.totalorder %s59, 0
      %s62 = sadd.s32 %s61, 1
      %s63 = scalar_select %p60, %s61, %s62
      %p66 = pneg %p60
      %p67 = scmp.eq.s32.totalorder %s13, 1
      %p68 = por %p66, %p67
      %p69 = scmp.ne.s32.totalorder %s61, %s64
      %p70 = scmp.eq.s32.totalorder %s13, 0
      %p71 = por %p69, %p70
      %p72 = scmp.ne.s32.totalorder %s61, %s64
      %p73 = scmp.eq.s32.totalorder %s18, 1
      %p74 = por %p72, %p73
      %p75 = scmp.ne.s32.totalorder %s64, %s65
      %p76 = scmp.eq.s32.totalorder %s18, 0
      %p77 = por %p75, %p76
      %p78 = scmp.ne.s32.totalorder %s64, %s65
      %p79 = scmp.eq.s32.totalorder %s19, 1
      %p80 = por %p78, %p79
      %p82 = scmp.ne.s32.totalorder %s65, %s81
      %p83 = scmp.eq.s32.totalorder %s19, 0
      %p84 = por %p82, %p83
      %s85 = ssub.s32 %s21, %s28
      %p86 = scmp.eq.s32.totalorder %s85, 0
      %s88 = sadd.s32 %s87, 1
      %s89 = scalar_select %p86, %s87, %s88
      %p92 = pneg %p86
      %p93 = scmp.eq.s32.totalorder %s13, 1
      %p94 = por %p92, %p93
      %p95 = scmp.ne.s32.totalorder %s87, %s90
      %p96 = scmp.eq.s32.totalorder %s13, 0
      %p97 = por %p95, %p96
      %p98 = scmp.ne.s32.totalorder %s87, %s90
      %p99 = scmp.eq.s32.totalorder %s18, 1
      %p100 = por %p98, %p99
      %p101 = scmp.ne.s32.totalorder %s90, %s91
      %p102 = scmp.eq.s32.totalorder %s18, 0
      %p103 = por %p101, %p102
      %p104 = scmp.ne.s32.totalorder %s90, %s91
      %p105 = scmp.eq.s32.totalorder %s19, 1
      %p106 = por %p104, %p105
      %p108 = scmp.ne.s32.totalorder %s91, %s107
      %p109 = scmp.eq.s32.totalorder %s19, 0
      %p110 = por %p108, %p109
      %s111 = ssub.s32 %s21, %s28
      %p112 = scmp.eq.s32.totalorder %s111, 0
      %s114 = sadd.s32 %s113, 1
      %s115 = scalar_select %p112, %s113, %s114
      %p118 = pneg %p112
      %p119 = scmp.eq.s32.totalorder %s13, 1
      %p120 = por %p118, %p119
      %p121 = scmp.ne.s32.totalorder %s113, %s116
      %p122 = scmp.eq.s32.totalorder %s13, 0
      %p123 = por %p121, %p122
      %p124 = scmp.ne.s32.totalorder %s113, %s116
      %p125 = scmp.eq.s32.totalorder %s18, 1
      %p126 = por %p124, %p125
      %p127 = scmp.ne.s32.totalorder %s116, %s117
      %p128 = scmp.eq.s32.totalorder %s18, 0
      %p129 = por %p127, %p128
      %p130 = scmp.ne.s32.totalorder %s116, %s117
      %p131 = scmp.eq.s32.totalorder %s19, 1
      %p132 = por %p130, %p131
      %p134 = scmp.ne.s32.totalorder %s117, %s133
      %p135 = scmp.eq.s32.totalorder %s19, 0
      %p136 = por %p134, %p135
      %s138 = sadd.s32 %s137, 1
      %p141 = scmp.eq.s32.totalorder %s13, 1
      %p142 = scmp.ne.s32.totalorder %s137, %s139
      %p143 = scmp.eq.s32.totalorder %s13, 0
      %p144 = por %p142, %p143
      %p145 = scmp.ne.s32.totalorder %s137, %s139
      %p146 = scmp.eq.s32.totalorder %s18, 1
      %p147 = por %p145, %p146
      %p148 = scmp.ne.s32.totalorder %s139, %s140
      %p149 = scmp.eq.s32.totalorder %s18, 0
      %p150 = por %p148, %p149
      %p151 = scmp.ne.s32.totalorder %s139, %s140
      %p152 = scmp.eq.s32.totalorder %s19, 1
      %p153 = por %p151, %p152
      %p155 = scmp.ne.s32.totalorder %s140, %s154
      %p156 = scmp.eq.s32.totalorder %s19, 0
      %p157 = por %p155, %p156
      %s158 = ssub.s32 %s20, %s32
      %p159 = scmp.eq.s32.totalorder %s158, 0
      %s161 = sadd.s32 %s160, 1
      %s162 = scalar_select %p159, %s160, %s161
      %p165 = pneg %p159
      %p166 = scmp.eq.s32.totalorder %s13, 1
      %p167 = por %p165, %p166
      %p168 = scmp.ne.s32.totalorder %s160, %s163
      %p169 = scmp.eq.s32.totalorder %s13, 0
      %p170 = por %p168, %p169
      %p171 = scmp.ne.s32.totalorder %s160, %s163
      %p172 = scmp.eq.s32.totalorder %s18, 1
      %p173 = por %p171, %p172
      %p174 = scmp.ne.s32.totalorder %s163, %s164
      %p175 = scmp.eq.s32.totalorder %s18, 0
      %p176 = por %p174, %p175
      %p177 = scmp.ne.s32.totalorder %s163, %s164
      %p178 = scmp.eq.s32.totalorder %s19, 1
      %p179 = por %p177, %p178
      %p181 = scmp.ne.s32.totalorder %s164, %s180
      %p182 = scmp.eq.s32.totalorder %s19, 0
      %p183 = por %p181, %p182
      %p184 = scmp.le.s32.totalorder 1, %s13
      %p185 = scmp.lt.s32.totalorder %s13, 3
      %p186 = pnand %p184, %p185
      %p187 = pneg %p186
      // Predicated region
      $region9: #{feedforward_pallas.1} parent=5 // pred_check
        _
      $region10: #{feedforward_pallas.1} parent=5 // pred_check_branch
        %189 = sbr.rel (%p186) target = $region12
      $region11: #{feedforward_pallas.1} parent=5 // pred_region
        %s190 = ssub.s32 %s13, 1
        // Predicated region
        $region13: #{feedforward_pallas.1} parent=11 // pred_check
          %p191 = pneg %p77
        $region14: #{feedforward_pallas.1} parent=11 // pred_check_branch
          %193 = sbr.rel (%p191) target = $region16
        $region15: #{feedforward_pallas.1} parent=11 // pred_region
          %s195 = ssub.s32 2048, 2048
          %196 = vsyncadd [#allocation4], %s195
          %s197 = smul.addr %s23, 128
          %s198 = scalar_lea.hbm %s1, %s197
          %s199 = sshll.u32 [#allocation3], 4
          %s200 = int_to_ptr.vmem [resolvable:$true] %s199
          %205 = dma.hbm_to_vmem [thread:$0]  %s198, 2048, %s200, [#allocation4], 128, 128, 8
        $region16: #{feedforward_pallas.1} parent=11 // pred_fallthru
          _
        // Predicated region
        $region17: #{feedforward_pallas.1} parent=11 // pred_check
          %p206 = pneg %p103
        $region18: #{feedforward_pallas.1} parent=11 // pred_check_branch
          %208 = sbr.rel (%p206) target = $region20
        $region19: #{feedforward_pallas.1} parent=11 // pred_region
          %p209 = scmp.lt.s32.totalorder %s23, 0
          %s210 = scalar_select %p209, %s23, 0
          %s211 = scalar_lea.vmem %s2, %s210
        $region20: #{feedforward_pallas.1} parent=11 // pred_fallthru
          _
        // Predicated region
        $region21: #{feedforward_pallas.1} parent=11 // pred_check
          %p212 = pneg %p129
        $region22: #{feedforward_pallas.1} parent=11 // pred_check_branch
          %214 = sbr.rel (%p212) target = $region24
        $region23: #{feedforward_pallas.1} parent=11 // pred_region
          %s215 = smul.u32 16, %s23
          %s217 = ssub.s32 2048, 2048
          %218 = vsyncadd [#allocation6], %s217
          %s219 = smul.addr %s215, 128
          %s220 = scalar_lea.hbm %s3, %s219
          %s221 = sshll.u32 [#allocation5], 4
          %s222 = int_to_ptr.vmem [resolvable:$true] %s221
          %227 = dma.hbm_to_vmem [thread:$0]  %s220, 2048, %s222, [#allocation6], 128, 128, 8
        $region24: #{feedforward_pallas.1} parent=11 // pred_fallthru
          _
        // Predicated region
        $region25: #{feedforward_pallas.1} parent=11 // pred_check
          %p228 = pneg %p150
        $region26: #{feedforward_pallas.1} parent=11 // pred_check_branch
          %230 = sbr.rel (%p228) target = $region28
        $region27: #{feedforward_pallas.1} parent=11 // pred_region
          _
        $region28: #{feedforward_pallas.1} parent=11 // pred_fallthru
          _
      $region12: #{feedforward_pallas.1} parent=5 // pred_fallthru
        _
      %p231 = scmp.lt.s32.totalorder %s13, 2
      // Predicated region
      $region29: #{feedforward_pallas.1} parent=5 // pred_check
        %p232 = pneg %p231
      $region30: #{feedforward_pallas.1} parent=5 // pred_check_branch
        %234 = sbr.rel (%p232) target = $region32
      $region31: #{feedforward_pallas.1} parent=5 // pred_region
        // Predicated region
        $region33: #{feedforward_pallas.1} parent=31 // pred_check
          %p235 = pneg %p45
        $region34: #{feedforward_pallas.1} parent=31 // pred_check_branch
          %237 = sbr.rel (%p235) target = $region36
        $region35: #{feedforward_pallas.1} parent=31 // pred_region
          %p238 = scmp.lt.s32.totalorder %s20, 1
          %s239 = scalar_select %p238, %s20, 1
          %s240 = smul.addr %s239, 8
          %s241 = scalar_lea.vmem %s0, %s240
        $region36: #{feedforward_pallas.1} parent=31 // pred_fallthru
          _
      $region32: #{feedforward_pallas.1} parent=5 // pred_fallthru
        _
      %p242 = scmp.le.s32.totalorder 1, %s13
      %p243 = scmp.lt.s32.totalorder %s13, 3
      %p244 = pnand %p242, %p243
      %p245 = pneg %p244
      // Predicated region
      $region37: #{feedforward_pallas.1} parent=5 // pred_check
        _
      $region38: #{feedforward_pallas.1} parent=5 // pred_check_branch
        %247 = sbr.rel (%p244) target = $region40
      $region39: #{feedforward_pallas.1} parent=5 // pred_region
        %s248 = ssub.s32 %s13, 1
        // Predicated region
        $region41: #{feedforward_pallas.1} parent=39 // pred_check
          %p249 = pneg %p77
        $region42: #{feedforward_pallas.1} parent=39 // pred_check_branch
          %251 = sbr.rel (%p249) target = $region44
        $region43: #{feedforward_pallas.1} parent=39 // pred_region
          %252 = dma.done [#allocation4], 2048
        $region44: #{feedforward_pallas.1} parent=39 // pred_fallthru
          _
        // Predicated region
        $region45: #{feedforward_pallas.1} parent=39 // pred_check
          %p253 = pneg %p129
        $region46: #{feedforward_pallas.1} parent=39 // pred_check_branch
          %255 = sbr.rel (%p253) target = $region48
        $region47: #{feedforward_pallas.1} parent=39 // pred_region
          %256 = dma.done [#allocation6], 2048
        $region48: #{feedforward_pallas.1} parent=39 // pred_fallthru
          _
        %p257 = scmp.lt.s32.totalorder %s22, 1
        %s258 = scalar_select %p257, %s22, 1
        %s259 = smul.addr %s258, 8
        %s260 = scalar_lea.vmem %s0, %s259
        %p261 = pneg %p51
        %p262 = pneg %p48
        %p263 = pneg %p77
        %p264 = pneg %p74
        %p265 = scmp.lt.s32.totalorder %s23, 0
        %s266 = scalar_select %p265, %s23, 0
        %s267 = scalar_lea.vmem %s2, %s266
        %p268 = pneg %p103
        %p269 = pneg %p100
        %p270 = pneg %p129
        %p271 = pneg %p126
        %p272 = pneg %p150
        %p273 = pneg %p147
        %p274 = pneg %p176
        %p275 = pneg %p173
        %p276 = scmp.lt.s32.totalorder %s22, 1
        %s277 = scalar_select %p276, %s22, 1
        %s278 = smul.addr %s277, 8
        %s279 = scalar_lea.vmem %s5, %s278
        %p280 = scmp.lt.s32.totalorder %s22, 1
        %s281 = scalar_select %p280, %s22, 1
        %s282 = smul.addr %s281, 8
        %s283 = scalar_lea.vmem %s0, %s282
        %p284 = scmp.lt.s32.totalorder %s23, 0
        %s285 = scalar_select %p284, %s23, 0
        %s286 = scalar_lea.vmem %s2, %s285
        %s287 = smul.u32 16, %s23
        %p288 = scmp.lt.s32.totalorder %s22, 1
        %s289 = scalar_select %p288, %s22, 1
        %s290 = smul.addr %s289, 8
        %s291 = scalar_lea.vmem %s5, %s290
        %p292 = scmp.eq.s32.totalorder %s23, 0
        // Predicated region
        $region49: #{feedforward_pallas.1} parent=39 // pred_check
          %p293 = pneg %p292
        $region50: #{feedforward_pallas.1} parent=39 // pred_check_branch
          %295 = sbr.rel (%p293) target = $region52
        $region51: #{feedforward_pallas.1} parent=39 // pred_region
          %296 = vst [vmem:[#allocation2] sm:$0xff] 0.0
        $region52: #{feedforward_pallas.1} parent=39 // pred_fallthru
          _
        %v297 = vld [vmem:[%s283] sm:$0xff]
        %v298 = vld [vmem:[#allocation3] sm:$0xff]
        %v299 = vld [vmem:[#allocation3 + $0x8] sm:$0xff]
        %v300 = vld [vmem:[#allocation3 + $0x10] sm:$0xff]
        %v301 = vld [vmem:[#allocation3 + $0x18] sm:$0xff]
        %v302 = vld [vmem:[#allocation3 + $0x20] sm:$0xff]
        %v303 = vld [vmem:[#allocation3 + $0x28] sm:$0xff]
        %v304 = vld [vmem:[#allocation3 + $0x30] sm:$0xff]
        %v305 = vld [vmem:[#allocation3 + $0x38] sm:$0xff]
        %v306 = vld [vmem:[#allocation3 + $0x40] sm:$0xff]
        %v307 = vld [vmem:[#allocation3 + $0x48] sm:$0xff]
        %v308 = vld [vmem:[#allocation3 + $0x50] sm:$0xff]
        %v309 = vld [vmem:[#allocation3 + $0x58] sm:$0xff]
        %v310 = vld [vmem:[#allocation3 + $0x60] sm:$0xff]
        %v311 = vld [vmem:[#allocation3 + $0x68] sm:$0xff]
        %v312 = vld [vmem:[#allocation3 + $0x70] sm:$0xff]
        %v313 = vld [vmem:[#allocation3 + $0x78] sm:$0xff]
        %v314 = vld [vmem:[%s286] sm:$0x1]
        %v316 = vlaneseq
        %v317 = vshrl.u32 %v316, 7
        %v318 = vsub.s32 0, %v317
        %v319 = vrot.slane %v314, %v318
        %321 = vmatprep.subr.mxu0 0.0
        %322 = vmatpush1.msra.mxu0 %v313
        %323 = vmatprep.subr.mxu0 0.0
        %324 = vmatpush1.msra.mxu0 %v312
        %325 = vmatprep.subr.mxu0 0.0
        %326 = vmatpush1.msra.mxu0 %v311
        %327 = vmatprep.subr.mxu0 0.0
        %328 = vmatpush1.msra.mxu0 %v310
        %329 = vmatprep.subr.mxu0 0.0
        %330 = vmatpush1.msra.mxu0 %v309
        %331 = vmatprep.subr.mxu0 0.0
        %332 = vmatpush1.msra.mxu0 %v308
        %333 = vmatprep.subr.mxu0 0.0
        %334 = vmatpush1.msra.mxu0 %v307
        %335 = vmatprep.subr.mxu0 0.0
        %336 = vmatpush1.msra.mxu0 %v306
        %337 = vmatprep.subr.mxu0 0.0
        %338 = vmatpush1.msra.mxu0 %v305
        %339 = vmatprep.subr.mxu0 0.0
        %340 = vmatpush1.msra.mxu0 %v304
        %341 = vmatprep.subr.mxu0 0.0
        %342 = vmatpush1.msra.mxu0 %v303
        %343 = vmatprep.subr.mxu0 0.0
        %344 = vmatpush1.msra.mxu0 %v302
        %345 = vmatprep.subr.mxu0 0.0
        %346 = vmatpush1.msra.mxu0 %v301
        %347 = vmatprep.subr.mxu0 0.0
        %348 = vmatpush1.msra.mxu0 %v300
        %349 = vmatprep.subr.mxu0 0.0
        %350 = vmatpush1.msra.mxu0 %v299
        %351 = vmatprep.subr.mxu0 0.0
        %352 = vmatpush1.msra.mxu0 %v298
        %353 = vmatprep.subr.mxu0 0.0
        %354 = vmatpush2.msra.mxu0 0.0
        %355 = vmatprep.subr.mxu0 0.0
        %356 = vmatpush2.msra.mxu0 0.0
        %357 = vmatprep.subr.mxu0 0.0
        %358 = vmatpush2.msra.mxu0 0.0
        %359 = vmatprep.subr.mxu0 0.0
        %360 = vmatpush2.msra.mxu0 0.0
        %361 = vmatprep.subr.mxu0 0.0
        %362 = vmatpush2.msra.mxu0 0.0
        %363 = vmatprep.subr.mxu0 0.0
        %364 = vmatpush2.msra.mxu0 0.0
        %365 = vmatprep.subr.mxu0 0.0
        %366 = vmatpush2.msra.mxu0 0.0
        %367 = vmatprep.subr.mxu0 0.0
        %368 = vmatpush2.msra.mxu0 0.0
        %369 = vmatprep.subr.mxu0 0.0
        %370 = vmatpush2.msra.mxu0 0.0
        %371 = vmatprep.subr.mxu0 0.0
        %372 = vmatpush2.msra.mxu0 0.0
        %373 = vmatprep.subr.mxu0 0.0
        %374 = vmatpush2.msra.mxu0 0.0
        %375 = vmatprep.subr.mxu0 0.0
        %376 = vmatpush2.msra.mxu0 0.0
        %377 = vmatprep.subr.mxu0 0.0
        %378 = vmatpush2.msra.mxu0 0.0
        %379 = vmatprep.subr.mxu0 0.0
        %380 = vmatpush2.msra.mxu0 0.0
        %381 = vmatprep.subr.mxu0 0.0
        %382 = vmatpush2.msra.mxu0 0.0
        %383 = vmatprep.subr.mxu0 0.0
        %384 = vmatpush2.msra.mxu0 0.0
        %385 = vmatprep.mubr.f32.mxu0 0.0
        %386 = vmatmul.mubr.f32.gmra.mxu0 %v297
        %v387 = vpop.f32.mrf.mxu0
        %v388 = vadd.f32 %v319, %v387
        %v389 = vpop.f32.mrf.mxu0
        %390 = vdwg.mxu0
        %v391 = vmul.f32 %v388, 0.5
        %v392 = vmul.f32 %v388, 0.70710677
        %v393 = verf.f32.pop %v392
        %v394 = vadd.f32 %v393, 1.0
        %v395 = vmul.f32 %v391, %v394
        %v396 = vld [vmem:[#allocation2] sm:$0xff]
        %v397 = vld [vmem:[#allocation5] sm:$0xff]
        %v398 = vld [vmem:[#allocation5 + $0x8] sm:$0xff]
        %v399 = vld [vmem:[#allocation5 + $0x10] sm:$0xff]
        %v400 = vld [vmem:[#allocation5 + $0x18] sm:$0xff]
        %v401 = vld [vmem:[#allocation5 + $0x20] sm:$0xff]
        %v402 = vld [vmem:[#allocation5 + $0x28] sm:$0xff]
        %v403 = vld [vmem:[#allocation5 + $0x30] sm:$0xff]
        %v404 = vld [vmem:[#allocation5 + $0x38] sm:$0xff]
        %v405 = vld [vmem:[#allocation5 + $0x40] sm:$0xff]
        %v406 = vld [vmem:[#allocation5 + $0x48] sm:$0xff]
        %v407 = vld [vmem:[#allocation5 + $0x50] sm:$0xff]
        %v408 = vld [vmem:[#allocation5 + $0x58] sm:$0xff]
        %v409 = vld [vmem:[#allocation5 + $0x60] sm:$0xff]
        %v410 = vld [vmem:[#allocation5 + $0x68] sm:$0xff]
        %v411 = vld [vmem:[#allocation5 + $0x70] sm:$0xff]
        %v412 = vld [vmem:[#allocation5 + $0x78] sm:$0xff]
        %413 = vmatprep.subr.mxu0 0.0
        %414 = vmatpush1.msra.mxu0 %v412
        %415 = vmatprep.subr.mxu0 0.0
        %416 = vmatpush1.msra.mxu0 %v411
        %417 = vmatprep.subr.mxu0 0.0
        %418 = vmatpush1.msra.mxu0 %v410
        %419 = vmatprep.subr.mxu0 0.0
        %420 = vmatpush1.msra.mxu0 %v409
        %421 = vmatprep.subr.mxu0 0.0
        %422 = vmatpush1.msra.mxu0 %v408
        %423 = vmatprep.subr.mxu0 0.0
        %424 = vmatpush1.msra.mxu0 %v407
        %425 = vmatprep.subr.mxu0 0.0
        %426 = vmatpush1.msra.mxu0 %v406
        %427 = vmatprep.subr.mxu0 0.0
        %428 = vmatpush1.msra.mxu0 %v405
        %429 = vmatprep.subr.mxu0 0.0
        %430 = vmatpush1.msra.mxu0 %v404
        %431 = vmatprep.subr.mxu0 0.0
        %432 = vmatpush1.msra.mxu0 %v403
        %433 = vmatprep.subr.mxu0 0.0
        %434 = vmatpush1.msra.mxu0 %v402
        %435 = vmatprep.subr.mxu0 0.0
        %436 = vmatpush1.msra.mxu0 %v401
        %437 = vmatprep.subr.mxu0 0.0
        %438 = vmatpush1.msra.mxu0 %v400
        %439 = vmatprep.subr.mxu0 0.0
        %440 = vmatpush1.msra.mxu0 %v399
        %441 = vmatprep.subr.mxu0 0.0
        %442 = vmatpush1.msra.mxu0 %v398
        %443 = vmatprep.subr.mxu0 0.0
        %444 = vmatpush1.msra.mxu0 %v397
        %445 = vmatprep.subr.mxu0 0.0
        %446 = vmatpush2.msra.mxu0 0.0
        %447 = vmatprep.subr.mxu0 0.0
        %448 = vmatpush2.msra.mxu0 0.0
        %449 = vmatprep.subr.mxu0 0.0
        %450 = vmatpush2.msra.mxu0 0.0
        %451 = vmatprep.subr.mxu0 0.0
        %452 = vmatpush2.msra.mxu0 0.0
        %453 = vmatprep.subr.mxu0 0.0
        %454 = vmatpush2.msra.mxu0 0.0
        %455 = vmatprep.subr.mxu0 0.0
        %456 = vmatpush2.msra.mxu0 0.0
        %457 = vmatprep.subr.mxu0 0.0
        %458 = vmatpush2.msra.mxu0 0.0
        %459 = vmatprep.subr.mxu0 0.0
        %460 = vmatpush2.msra.mxu0 0.0
        %461 = vmatprep.subr.mxu0 0.0
        %462 = vmatpush2.msra.mxu0 0.0
        %463 = vmatprep.subr.mxu0 0.0
        %464 = vmatpush2.msra.mxu0 0.0
        %465 = vmatprep.subr.mxu0 0.0
        %466 = vmatpush2.msra.mxu0 0.0
        %467 = vmatprep.subr.mxu0 0.0
        %468 = vmatpush2.msra.mxu0 0.0
        %469 = vmatprep.subr.mxu0 0.0
        %470 = vmatpush2.msra.mxu0 0.0
        %471 = vmatprep.subr.mxu0 0.0
        %472 = vmatpush2.msra.mxu0 0.0
        %473 = vmatprep.subr.mxu0 0.0
        %474 = vmatpush2.msra.mxu0 0.0
        %475 = vmatprep.subr.mxu0 0.0
        %476 = vmatpush2.msra.mxu0 0.0
        %477 = vmatprep.mubr.f32.mxu0 0.0
        %478 = vmatmul.mubr.f32.gmra.mxu0 %v395
        %v479 = vpop.f32.mrf.mxu0
        %v480 = vadd.f32 0.0, %v479
        %v481 = vpop.f32.mrf.mxu0
        %482 = vdwg.mxu0
        %v483 = vadd.f32 %v396, %v480
        %484 = vst [vmem:[#allocation2] sm:$0xff] %v483
        // Predicated region
        $region53: #{feedforward_pallas.1} parent=39 // pred_check
          %p485 = pneg %p292
        $region54: #{feedforward_pallas.1} parent=39 // pred_check_branch
          %487 = sbr.rel (%p485) target = $region56
        $region55: #{feedforward_pallas.1} parent=39 // pred_region
          %v488 = vld [vmem:[#allocation2] sm:$0xff]
          %v489 = vld [vmem:[%s4] sm:$0x1]
          %v491 = vlaneseq
          %v492 = vshrl.u32 %v491, 7
          %v493 = vsub.s32 0, %v492
          %v494 = vrot.slane %v489, %v493
          %v496 = vadd.f32 %v488, %v494
          %497 = vst [vmem:[%s291] sm:$0xff] %v496
        $region56: #{feedforward_pallas.1} parent=39 // pred_fallthru
          _
        %p498 = scmp.lt.s32.totalorder %s22, 1
        %s499 = scalar_select %p498, %s22, 1
        %s500 = smul.addr %s499, 8
        %s501 = scalar_lea.vmem %s5, %s500
        // Predicated region
        $region57: #{feedforward_pallas.1} parent=39 // pred_check
          %p502 = pneg %p173
        $region58: #{feedforward_pallas.1} parent=39 // pred_check_branch
          %504 = sbr.rel (%p502) target = $region60
        $region59: #{feedforward_pallas.1} parent=39 // pred_region
          _
        $region60: #{feedforward_pallas.1} parent=39 // pred_fallthru
          _
      $region40: #{feedforward_pallas.1} parent=5 // pred_fallthru
        _
      %p505 = scmp.le.s32.totalorder 2, %s13
      // Predicated region
      $region61: #{feedforward_pallas.1} parent=5 // pred_check
        %p506 = pneg %p505
      $region62: #{feedforward_pallas.1} parent=5 // pred_check_branch
        %508 = sbr.rel (%p506) target = $region64
      $region63: #{feedforward_pallas.1} parent=5 // pred_region
        %s509 = ssub.s32 %s13, 2
        // Predicated region
        $region65: #{feedforward_pallas.1} parent=63 // pred_check
          %p510 = pneg %p179
        $region66: #{feedforward_pallas.1} parent=63 // pred_check_branch
          %512 = sbr.rel (%p510) target = $region68
        $region67: #{feedforward_pallas.1} parent=63 // pred_region
          %p513 = scmp.lt.s32.totalorder %s24, 1
          %s514 = scalar_select %p513, %s24, 1
          %s515 = smul.addr %s514, 8
          %s516 = scalar_lea.vmem %s5, %s515
        $region68: #{feedforward_pallas.1} parent=63 // pred_fallthru
          _
      $region64: #{feedforward_pallas.1} parent=5 // pred_fallthru
        _
    $region6: #{feedforward_pallas.1} parent=1 // loop_footer
      %s17 = sadd.s32 1, %s13
    $region7: #{feedforward_pallas.1} parent=1 // loop_footer_branch
      %12 = sbr.rel target = $region3
    $region8: #{feedforward_pallas.1} parent=1 // loop_exit
      _
    %517 = vsyncpa [#allocation4], 1
    %s518 = scalar_lea.sflag [#allocation4], 1
    %519 = vsyncpa %s518, 1
    %520 = vsyncpa [#allocation6], 1

</llo_original>
